<compile_context>
chip_gen: v7x
topology: tpu7x:2x2x1
jax: 0.10.0
libtpu: 0.0.40
codegen_flags: <defaults>
</compile_context>

<pallas_src>
import jax
import jax.numpy as jnp
from jax.experimental import pallas as pl
from jax.experimental.pallas import tpu as pltpu

NUM_INPUT_CHANNELS = 109   # input_channels['vector']
NUM_HIDDEN = 128
MAX_TB = 4096              # batch tile (rows per grid step); ~15 MiB working set


def _round_up(n, m):
    return (n + m - 1) // m * m


def _swish(x):
    # x * sigmoid(x), with sigmoid(x) == 0.5 * (tanh(x/2) + 1): one EUP
    # transcendental per element instead of exp + reciprocal.
    return x * (0.5 * (jnp.tanh(0.5 * x) + 1.0))


def mlp_kernel(x_ref, w1_ref, b1_ref, w2_ref, b2_ref, w3r_ref, b3_ref, o_ref):
    # x tile: [TB, 109] f32 (cast to bf16 here, inside the kernel)
    # w1: [109, 128] bf16;  w2: [128, 128] bf16
    # b1/b2: [1, 128] f32;  w3r: [1, 128] f32 (third layer as a row);  b3: [1, 1] f32
    x = x_ref[...].astype(jnp.bfloat16)

    h1 = jnp.dot(x, w1_ref[...], preferred_element_type=jnp.float32) + b1_ref[...]
    h1 = _swish(h1)                                            # f32 on VPU/EUP

    h2 = jnp.dot(h1.astype(jnp.bfloat16), w2_ref[...],
                 preferred_element_type=jnp.float32) + b2_ref[...]
    h2 = _swish(h2)                                            # f32 on VPU/EUP

    # Layer 3 (out_features = 1): VPU multiply + XLU lane reduce instead of a
    # 1-lane-wide MXU pass (hidden under the two real matmuls).
    h3 = jnp.sum(h2 * w3r_ref[...], axis=-1, keepdims=True) + b3_ref[...]
    o_ref[...] = jnp.tanh(h3).astype(o_ref.dtype)


def prepare_params(params):
    """Cast matmul weights to bf16 and lay out layer-3 weight as a [1, H] row."""
    w1, b1, w2, b2, w3, b3 = params
    return (w1.astype(jnp.bfloat16), b1,
            w2.astype(jnp.bfloat16), b2,
            w3.reshape(NUM_HIDDEN, 1).T.astype(jnp.float32),   # [1, 128]
            b3.reshape(1, 1))


def mlp_forward(x_vector, kernel_params):
    """x_vector: [B, 109] float32. Returns [B, 1] float32."""
    w1, b1, w2, b2, w3r, b3 = kernel_params
    B, F = x_vector.shape
    H = NUM_HIDDEN

    # Batch tile: multiple of 8, capped at MAX_TB. cdiv grid -> Pallas masks the
    # ragged last block (no HBM pad pass; rows are independent, so junk lanes in
    # the padded part of the last tile are simply never written back).
    TB = min(MAX_TB, _round_up(max(B, 8), 8))
    grid = (pl.cdiv(B, TB),)

    # Weights/biases: constant block index -> VMEM-resident across the whole
    # grid; Buffered(1) avoids allocating an unused second pipeline buffer.
    def pinned(shape):
        return pl.BlockSpec(shape, lambda i: (0,) * len(shape),
                            pipeline_mode=pl.Buffered(1))

    out = pl.pallas_call(
        mlp_kernel,
        out_shape=jax.ShapeDtypeStruct((B, 1), jnp.float32),
        grid=grid,
        in_specs=[
            pl.BlockSpec((TB, F), lambda i: (i, 0)),   # x: batch-tiled, pipelined
            pinned((F, H)), pinned((1, H)),            # w1, b1 (VMEM-resident)
            pinned((H, H)), pinned((1, H)),            # w2, b2
            pinned((1, H)), pinned((1, 1)),            # w3 row, b3
        ],
        out_specs=pl.BlockSpec((TB, 1), lambda i: (i, 0)),
        compiler_params=pltpu.CompilerParams(
            dimension_semantics=("parallel",),         # shard batch axis across TCs (v7x)
        ),
    )(x_vector, w1, b1, w2, b2, w3r, b3)

    return out


def init_params(key):
    """Deterministic init mimicking PyTorch nn.Linear default (U(-1/sqrt(fan_in), +))."""
    def linear(key, fan_in, fan_out):
        kw, kb = jax.random.split(key)
        bound = 1.0 / jnp.sqrt(fan_in)
        # stored [in, out] so forward is x @ W
        w = jax.random.uniform(kw, (fan_in, fan_out), jnp.float32, -bound, bound)
        b = jax.random.uniform(kb, (1, fan_out), jnp.float32, -bound, bound)
        return w, b

    k1, k2, k3 = jax.random.split(key, 3)
    w1, b1 = linear(k1, NUM_INPUT_CHANNELS, NUM_HIDDEN)
    w2, b2 = linear(k2, NUM_HIDDEN, NUM_HIDDEN)
    w3, b3 = linear(k3, NUM_HIDDEN, 1)
    return (w1, b1, w2, b2, w3, b3)


def mlp_reference(x_vector, params):
    w1, b1, w2, b2, w3, b3 = params
    swish = lambda v: v * jax.nn.sigmoid(v)
    h = swish(x_vector @ w1 + b1)
    h = swish(h @ w2 + b2)
    return jnp.tanh(h @ w3 + b3)


if __name__ == "__main__":
    key = jax.random.PRNGKey(0)
    k_param, k_x1, k_x2 = jax.random.split(key, 3)

    params = init_params(k_param)
    kernel_params = prepare_params(params)

    # Unused inputs of the reference forward (kept for interface parity).
    x_grid = None
    x_grid_vector = None

    # Small batch (exactly one aligned tile).
    B1 = 8
    x1 = jax.random.normal(k_x1, (B1, NUM_INPUT_CHANNELS), jnp.float32)
    out1 = jax.block_until_ready(mlp_forward(x1, kernel_params))
    ref1 = mlp_reference(x1, params)
    assert out1.shape == (B1, 1)
    # bf16 MXU operands (f32 accumulation) -> loosen tolerance vs the f32 reference.
    assert jnp.allclose(out1, ref1, atol=2e-2, rtol=2e-2), "mismatch vs JAX reference (B=8)"

    # Ragged batch (exercises the masked last block of the cdiv grid).
    B2 = 300
    x2 = jax.random.normal(k_x2, (B2, NUM_INPUT_CHANNELS), jnp.float32)
    out2 = jax.block_until_ready(mlp_forward(x2, kernel_params))
    ref2 = mlp_reference(x2, params)
    assert out2.shape == (B2, 1)
    assert jnp.allclose(out2, ref2, atol=2e-2, rtol=2e-2), "mismatch vs JAX reference (B=300)"

    print("KERNEL_OK")
</pallas_src>

<mosaic_0001>
module attributes {stable_mosaic.version = 11 : i64} {
  func.func @mlp_kernel(%arg0: i32, %arg1: memref<8x109xf32, #tpu.memory_space<vmem>>, %arg2: memref<109x128xbf16, #tpu.memory_space<vmem>>, %arg3: memref<1x128xf32, #tpu.memory_space<vmem>>, %arg4: memref<128x128xbf16, #tpu.memory_space<vmem>>, %arg5: memref<1x128xf32, #tpu.memory_space<vmem>>, %arg6: memref<1x128xf32, #tpu.memory_space<vmem>>, %arg7: memref<1x1xf32, #tpu.memory_space<vmem>>, %arg8: memref<8x1xf32, #tpu.memory_space<vmem>>) attributes {dimension_semantics = [#tpu.dimension_semantics<parallel>], iteration_bounds = array<i64: 1>, scalar_prefetch = 0 : i64, scratch_operands = 0 : i64, tpu.core_type = #tpu.core_type<tc>, window_params = [{transform_indices = @transform_0, window_bounds = array<i64: 8, 109>}, {pipeline_mode = #tpu.pipeline_mode<synchronous>, transform_indices = @transform_1, window_bounds = array<i64: 109, 128>}, {pipeline_mode = #tpu.pipeline_mode<synchronous>, transform_indices = @transform_2, window_bounds = array<i64: 1, 128>}, {pipeline_mode = #tpu.pipeline_mode<synchronous>, transform_indices = @transform_3, window_bounds = array<i64: 128, 128>}, {pipeline_mode = #tpu.pipeline_mode<synchronous>, transform_indices = @transform_4, window_bounds = array<i64: 1, 128>}, {pipeline_mode = #tpu.pipeline_mode<synchronous>, transform_indices = @transform_5, window_bounds = array<i64: 1, 128>}, {pipeline_mode = #tpu.pipeline_mode<synchronous>, transform_indices = @transform_6, window_bounds = array<i64: 1, 1>}, {transform_indices = @transform_7, window_bounds = array<i64: 8, 1>}]} {
    %c0 = arith.constant 0 : index
    %c0_0 = arith.constant 0 : index
    %0 = vector.load %arg1[%c0, %c0_0] : memref<8x109xf32, #tpu.memory_space<vmem>>, vector<8x109xf32>
    %1 = arith.truncf %0 : vector<8x109xf32> to vector<8x109xbf16>
    %c0_1 = arith.constant 0 : index
    %c0_2 = arith.constant 0 : index
    %2 = vector.load %arg2[%c0_1, %c0_2] : memref<109x128xbf16, #tpu.memory_space<vmem>>, vector<109x128xbf16>
    %cst = arith.constant dense<0.000000e+00> : vector<8x128xf32>
    %3 = tpu.matmul %1, %2, %cst {dimension_numbers = #tpu.dot_dimension_numbers<[1], [0], [0], [1], [0, 0, 1, 1], [], []>} : vector<8x109xbf16>, vector<109x128xbf16>, vector<8x128xf32> -> vector<8x128xf32>
    %c0_3 = arith.constant 0 : index
    %c0_4 = arith.constant 0 : index
    %4 = vector.load %arg3[%c0_3, %c0_4] : memref<1x128xf32, #tpu.memory_space<vmem>>, vector<1x128xf32>
    %5 = vector.broadcast %4 : vector<1x128xf32> to vector<8x128xf32>
    %6 = arith.addf %3, %5 : vector<8x128xf32>
    %cst_5 = arith.constant 5.000000e-01 : f32
    %7 = vector.broadcast %cst_5 : f32 to vector<8x128xf32>
    %8 = arith.mulf %7, %6 : vector<8x128xf32>
    %9 = math.tanh %8 : vector<8x128xf32>
    %cst_6 = arith.constant 1.000000e+00 : f32
    %10 = vector.broadcast %cst_6 : f32 to vector<8x128xf32>
    %11 = arith.addf %9, %10 : vector<8x128xf32>
    %cst_7 = arith.constant 5.000000e-01 : f32
    %12 = vector.broadcast %cst_7 : f32 to vector<8x128xf32>
    %13 = arith.mulf %12, %11 : vector<8x128xf32>
    %14 = arith.mulf %6, %13 : vector<8x128xf32>
    %15 = arith.truncf %14 : vector<8x128xf32> to vector<8x128xbf16>
    %c0_8 = arith.constant 0 : index
    %c0_9 = arith.constant 0 : index
    %16 = vector.load %arg4[%c0_8, %c0_9] : memref<128x128xbf16, #tpu.memory_space<vmem>>, vector<128x128xbf16>
    %cst_10 = arith.constant dense<0.000000e+00> : vector<8x128xf32>
    %17 = tpu.matmul %15, %16, %cst_10 {dimension_numbers = #tpu.dot_dimension_numbers<[1], [0], [0], [1], [0, 0, 1, 1], [], []>} : vector<8x128xbf16>, vector<128x128xbf16>, vector<8x128xf32> -> vector<8x128xf32>
    %c0_11 = arith.constant 0 : index
    %c0_12 = arith.constant 0 : index
    %18 = vector.load %arg5[%c0_11, %c0_12] : memref<1x128xf32, #tpu.memory_space<vmem>>, vector<1x128xf32>
    %19 = vector.broadcast %18 : vector<1x128xf32> to vector<8x128xf32>
    %20 = arith.addf %17, %19 : vector<8x128xf32>
    %cst_13 = arith.constant 5.000000e-01 : f32
    %21 = vector.broadcast %cst_13 : f32 to vector<8x128xf32>
    %22 = arith.mulf %21, %20 : vector<8x128xf32>
    %23 = math.tanh %22 : vector<8x128xf32>
    %cst_14 = arith.constant 1.000000e+00 : f32
    %24 = vector.broadcast %cst_14 : f32 to vector<8x128xf32>
    %25 = arith.addf %23, %24 : vector<8x128xf32>
    %cst_15 = arith.constant 5.000000e-01 : f32
    %26 = vector.broadcast %cst_15 : f32 to vector<8x128xf32>
    %27 = arith.mulf %26, %25 : vector<8x128xf32>
    %28 = arith.mulf %20, %27 : vector<8x128xf32>
    %c0_16 = arith.constant 0 : index
    %c0_17 = arith.constant 0 : index
    %29 = vector.load %arg6[%c0_16, %c0_17] : memref<1x128xf32, #tpu.memory_space<vmem>>, vector<1x128xf32>
    %30 = vector.broadcast %29 : vector<1x128xf32> to vector<8x128xf32>
    %31 = arith.mulf %28, %30 : vector<8x128xf32>
    %cst_18 = arith.constant dense<0.000000e+00> : vector<8xf32>
    %32 = vector.multi_reduction <add>, %31, %cst_18 [1] : vector<8x128xf32> to vector<8xf32>
    %33 = vector.shape_cast %32 : vector<8xf32> to vector<8x1xf32>
    %c0_19 = arith.constant 0 : index
    %c0_20 = arith.constant 0 : index
    %34 = vector.load %arg7[%c0_19, %c0_20] : memref<1x1xf32, #tpu.memory_space<vmem>>, vector<1x1xf32>
    %35 = vector.broadcast %34 : vector<1x1xf32> to vector<8x1xf32>
    %36 = arith.addf %33, %35 : vector<8x1xf32>
    %37 = math.tanh %36 : vector<8x1xf32>
    %c0_21 = arith.constant 0 : index
    %c0_22 = arith.constant 0 : index
    %38 = vector.load %arg8[%c0_21, %c0_22] : memref<8x1xf32, #tpu.memory_space<vmem>>, vector<8x1xf32>
    tpu.vector_store %arg8[%c0_21, %c0_22], %37 {strides = array<i32>} : memref<8x1xf32, #tpu.memory_space<vmem>>, vector<8x1xf32>,
    return
  }
  func.func @transform_0(%arg0: i32) -> (i32, i32) {
    %c0_i32 = arith.constant 0 : i32
    %c0_i32_0 = arith.constant 0 : i32
    return %arg0, %c0_i32 : i32, i32
  }
  func.func @transform_1(%arg0: i32) -> (i32, i32) {
    %c0_i32 = arith.constant 0 : i32
    %c0_i32_0 = arith.constant 0 : i32
    %c0_i32_1 = arith.constant 0 : i32
    return %c0_i32, %c0_i32_0 : i32, i32
  }
  func.func @transform_2(%arg0: i32) -> (i32, i32) {
    %c0_i32 = arith.constant 0 : i32
    %c0_i32_0 = arith.constant 0 : i32
    %c0_i32_1 = arith.constant 0 : i32
    return %c0_i32, %c0_i32_0 : i32, i32
  }
  func.func @transform_3(%arg0: i32) -> (i32, i32) {
    %c0_i32 = arith.constant 0 : i32
    %c0_i32_0 = arith.constant 0 : i32
    %c0_i32_1 = arith.constant 0 : i32
    return %c0_i32, %c0_i32_0 : i32, i32
  }
  func.func @transform_4(%arg0: i32) -> (i32, i32) {
    %c0_i32 = arith.constant 0 : i32
    %c0_i32_0 = arith.constant 0 : i32
    %c0_i32_1 = arith.constant 0 : i32
    return %c0_i32, %c0_i32_0 : i32, i32
  }
  func.func @transform_5(%arg0: i32) -> (i32, i32) {
    %c0_i32 = arith.constant 0 : i32
    %c0_i32_0 = arith.constant 0 : i32
    %c0_i32_1 = arith.constant 0 : i32
    return %c0_i32, %c0_i32_0 : i32, i32
  }
  func.func @transform_6(%arg0: i32) -> (i32, i32) {
    %c0_i32 = arith.constant 0 : i32
    %c0_i32_0 = arith.constant 0 : i32
    %c0_i32_1 = arith.constant 0 : i32
    return %c0_i32, %c0_i32_0 : i32, i32
  }
  func.func @transform_7(%arg0: i32) -> (i32, i32) {
    %c0_i32 = arith.constant 0 : i32
    %c0_i32_0 = arith.constant 0 : i32
    return %arg0, %c0_i32 : i32, i32
  }
}

</mosaic_0001>

<llo_original>
// kernel: tpu_custom_call.1
$region0: #{tpu_custom_call.1}
  #allocation0 [shape = 'u32[]', space=smem, size = 0x4, offset = 0x4, fixed_abs, tag = 'smem constant byte address 0x4 - core index']
  #allocation1 [shape = 'u32[144,128]{1,0:T(1,128)}', space=vmem, size = 0x12000, scoped, tag = 'internal scratch']
  #allocation2 [shape = 'f32[1,1]{1,0:T(1,128)S(1)}', space=vmem, size = 0x200, scoped, tag = 'scoped memory for tpu_custom_call.1']
  %s0 = inlined_call_operand.hbm [shape: f32[8,109], index: 0, kind: input, shape index: {}]
  %s1 = inlined_call_operand.hbm [shape: bf16[109,128], index: 1, kind: input, shape index: {}]
  %s2 = inlined_call_operand.vmem [shape: f32[1,128], index: 2, kind: input, shape index: {}]
  %s3 = inlined_call_operand.hbm [shape: bf16[128,128], index: 3, kind: input, shape index: {}]
  %s4 = inlined_call_operand.vmem [shape: f32[1,128], index: 4, kind: input, shape index: {}]
  %s5 = inlined_call_operand.vmem [shape: f32[1,128], index: 5, kind: input, shape index: {}]
  %s6 = inlined_call_operand.<no memory space> [shape: f32[1,1], index: 6, kind: input, shape index: {}]
  %s7 = inlined_call_operand.vmem [shape: f32[8,1], index: 7, kind: output, shape index: {}]
  %s8 = sld [smem:[#allocation0]]
  $region50: #{tpu_custom_call.1} parent=0
    _
  %s10 = ssub.s32 1, %s8
  %s11 = scalar_select 0, %s10, %s8
  %v12 = vstv %s6
  %13 = vst [vmem:[#allocation2] sm:$0x1] %v12
  $region1: #{tpu_custom_call.1} parent=0
    #allocation3 [shape = 'u8[4096]{0}', space=vmem, size = 0x1000, scoped, tag = 'input window, operand 0, single buffered']
    #allocation4 [shape = 's32[1]{0}', space=sflag, size = 0x4, scoped, tag = 'scoped memory for tpu_custom_call.1']
    #allocation5 [shape = 'u8[28672]{0}', space=vmem, size = 0x7000, scoped, tag = 'input window, operand 1, single buffered']
    #allocation6 [shape = 's32[1]{0}', space=sflag, size = 0x4, scoped, tag = 'scoped memory for tpu_custom_call.1']
    #allocation7 [shape = 'u8[32768]{0}', space=vmem, size = 0x8000, scoped, tag = 'input window, operand 3, single buffered']
    %14 = vsyncpa [#allocation4], 0
    %15 = vsyncpa [#allocation6], 0
    // Predicated region
    $region2: #{tpu_custom_call.1} parent=1 // pred_check
      _
    $region3: #{tpu_custom_call.1} parent=1 // pred_check_branch
      %17 = sbr.rel (0) target = $region5
    $region4: #{tpu_custom_call.1} parent=1 // pred_region
      %s19 = ssub.s32 128, 128
      %20 = vsyncadd [#allocation4], %s19
      %s22 = sshll.u32 [#allocation3], 4
      %s23 = int_to_ptr.vmem [resolvable:$true] %s22
      %25 = dma.hbm_to_vmem [thread:$0]  %s0, 128, %s23, [#allocation4]
    $region5: #{tpu_custom_call.1} parent=1 // pred_fallthru
      _
    // Predicated region
    $region6: #{tpu_custom_call.1} parent=1 // pred_check
      _
    $region7: #{tpu_custom_call.1} parent=1 // pred_check_branch
      %27 = sbr.rel (0) target = $region9
    $region8: #{tpu_custom_call.1} parent=1 // pred_region
      %s29 = ssub.s32 896, 896
      %30 = vsyncadd [#allocation6], %s29
      %s31 = sshll.u32 [#allocation5], 4
      %s32 = int_to_ptr.vmem [resolvable:$true] %s31
      %37 = dma.hbm_to_vmem [thread:$0]  %s1, 896, %s32, [#allocation6], 64, 64, 4
    $region9: #{tpu_custom_call.1} parent=1 // pred_fallthru
      _
    // Predicated region
    $region10: #{tpu_custom_call.1} parent=1 // pred_check
      _
    $region11: #{tpu_custom_call.1} parent=1 // pred_check_branch
      %39 = sbr.rel (0) target = $region13
    $region12: #{tpu_custom_call.1} parent=1 // pred_region
      _
    $region13: #{tpu_custom_call.1} parent=1 // pred_fallthru
      _
    // Predicated region
    $region14: #{tpu_custom_call.1} parent=1 // pred_check
      _
    $region15: #{tpu_custom_call.1} parent=1 // pred_check_branch
      %41 = sbr.rel (0) target = $region17
    $region16: #{tpu_custom_call.1} parent=1 // pred_region
      %s43 = ssub.s32 1024, 1024
      %44 = vsyncadd [#allocation6], %s43
      %s45 = sshll.u32 [#allocation7], 4
      %s46 = int_to_ptr.vmem [resolvable:$true] %s45
      %51 = dma.hbm_to_vmem [thread:$0]  %s3, 1024, %s46, [#allocation6], 64, 64, 4
    $region17: #{tpu_custom_call.1} parent=1 // pred_fallthru
      _
    // Predicated region
    $region18: #{tpu_custom_call.1} parent=1 // pred_check
      _
    $region19: #{tpu_custom_call.1} parent=1 // pred_check_branch
      %53 = sbr.rel (0) target = $region21
    $region20: #{tpu_custom_call.1} parent=1 // pred_region
      _
    $region21: #{tpu_custom_call.1} parent=1 // pred_fallthru
      _
    // Predicated region
    $region22: #{tpu_custom_call.1} parent=1 // pred_check
      _
    $region23: #{tpu_custom_call.1} parent=1 // pred_check_branch
      %55 = sbr.rel (0) target = $region25
    $region24: #{tpu_custom_call.1} parent=1 // pred_region
      _
    $region25: #{tpu_custom_call.1} parent=1 // pred_fallthru
      _
    // Predicated region
    $region26: #{tpu_custom_call.1} parent=1 // pred_check
      _
    $region27: #{tpu_custom_call.1} parent=1 // pred_check_branch
      %57 = sbr.rel (0) target = $region29
    $region28: #{tpu_custom_call.1} parent=1 // pred_region
      _
    $region29: #{tpu_custom_call.1} parent=1 // pred_fallthru
      _
    // Predicated region
    $region30: #{tpu_custom_call.1} parent=1 // pred_check
      _
    $region31: #{tpu_custom_call.1} parent=1 // pred_check_branch
      %59 = sbr.rel (0) target = $region33
    $region32: #{tpu_custom_call.1} parent=1 // pred_region
      %60 = dma.done [#allocation4], 128
    $region33: #{tpu_custom_call.1} parent=1 // pred_fallthru
      _
    // Predicated region
    $region34: #{tpu_custom_call.1} parent=1 // pred_check
      _
    $region35: #{tpu_custom_call.1} parent=1 // pred_check_branch
      %62 = sbr.rel (0) target = $region37
    $region36: #{tpu_custom_call.1} parent=1 // pred_region
      %63 = dma.done [#allocation6], 896
    $region37: #{tpu_custom_call.1} parent=1 // pred_fallthru
      _
    // Predicated region
    $region38: #{tpu_custom_call.1} parent=1 // pred_check
      _
    $region39: #{tpu_custom_call.1} parent=1 // pred_check_branch
      %65 = sbr.rel (0) target = $region41
    $region40: #{tpu_custom_call.1} parent=1 // pred_region
      %66 = dma.done [#allocation6], 1024
    $region41: #{tpu_custom_call.1} parent=1 // pred_fallthru
      _
    %v68 = vld [vmem:[#allocation3] sm:$0xff]
    %v69 = vpack.c.bf16 %v68, %v68
    %v70 = vld [vmem:[#allocation5] sm:$0xf]
    %v71 = vld [vmem:[#allocation5 + $0x4] sm:$0xf]
    %v72 = vld [vmem:[#allocation5 + $0x8] sm:$0xf]
    %v73 = vld [vmem:[#allocation5 + $0xc] sm:$0xf]
    %v74 = vld [vmem:[#allocation5 + $0x10] sm:$0xf]
    %v75 = vld [vmem:[#allocation5 + $0x14] sm:$0xf]
    %v76 = vld [vmem:[#allocation5 + $0x18] sm:$0xf]
    %v77 = vld [vmem:[#allocation5 + $0x1c] sm:$0xf]
    %v78 = vld [vmem:[#allocation5 + $0x20] sm:$0xf]
    %v79 = vld [vmem:[#allocation5 + $0x24] sm:$0xf]
    %v80 = vld [vmem:[#allocation5 + $0x28] sm:$0xf]
    %v81 = vld [vmem:[#allocation5 + $0x2c] sm:$0xf]
    %v82 = vld [vmem:[#allocation5 + $0x30] sm:$0xf]
    %v83 = vld [vmem:[#allocation5 + $0x34] sm:$0x7]
    %v84 = vld [vmem:[%s2] sm:$0x1]
    %v86 = vlaneseq
    %v87 = vshrl.u32 %v86, 7
    %v88 = vsub.s32 0, %v87
    %v89 = vrot.slane %v84, %v88
    %v105 = vunpack.c.l.b16 %v70
    %v106 = vunpack.c.l.b16 %v71
    %v107 = vunpack.c.l.b16 %v72
    %v108 = vunpack.c.l.b16 %v73
    %v109 = vunpack.c.l.b16 %v74
    %v110 = vunpack.c.l.b16 %v75
    %v111 = vunpack.c.l.b16 %v76
    %v112 = vunpack.c.l.b16 %v77
    %v113 = vunpack.c.l.b16 %v78
    %v114 = vunpack.c.l.b16 %v79
    %v115 = vunpack.c.l.b16 %v80
    %v116 = vunpack.c.l.b16 %v81
    %v117 = vunpack.c.l.b16 %v82
    %v118 = vunpack.c.l.b16 %v83
    %v119 = vpack.c.b16 %v106, %v105
    %v120 = vpack.c.b16 %v108, %v107
    %v121 = vpack.c.b16 %v110, %v109
    %v122 = vpack.c.b16 %v112, %v111
    %v123 = vpack.c.b16 %v114, %v113
    %v124 = vpack.c.b16 %v116, %v115
    %v125 = vpack.c.b16 %v118, %v117
    %vm132 = vcmask 891904
    %v134 = vsel %vm132, %v69, 0
    %vm136 = vcmask 1045504
    %vm137 = vcmask 1046528
    %v138 = vsel %vm136, 4294967295, 65535
    %v139 = vsel %vm137, %v138, 0
    %v141 = vand.u32 %v125, %v139
    %143 = vmatprep.subr.bf16.mxu0 0
    %144 = vmatpush1.bf16.msra.mxu0 %v119
    %145 = vmatprep.subr.bf16.mxu0 0
    %146 = vmatpush1.bf16.msra.mxu0 %v120
    %147 = vmatprep.subr.bf16.mxu0 0
    %148 = vmatpush1.bf16.msra.mxu0 %v121
    %149 = vmatprep.subr.bf16.mxu0 0
    %150 = vmatpush1.bf16.msra.mxu0 %v122
    %151 = vmatprep.subr.bf16.mxu0 0
    %152 = vmatpush1.bf16.msra.mxu0 %v123
    %153 = vmatprep.subr.bf16.mxu0 0
    %154 = vmatpush1.bf16.msra.mxu0 %v124
    %155 = vmatprep.subr.bf16.mxu0 0
    %156 = vmatpush1.bf16.msra.mxu0 %v141
    %157 = vmatprep.subr.bf16.mxu0 0
    %158 = vmatpush1.bf16.msra.mxu0 0
    %159 = vmatprep.subr.bf16.mxu0 0
    %160 = vmatpush1.bf16.msra.mxu0 0
    %161 = vmatprep.subr.bf16.mxu0 0
    %162 = vmatpush1.bf16.msra.mxu0 0
    %163 = vmatprep.subr.bf16.mxu0 0
    %164 = vmatpush1.bf16.msra.mxu0 0
    %165 = vmatprep.subr.bf16.mxu0 0
    %166 = vmatpush1.bf16.msra.mxu0 0
    %167 = vmatprep.subr.bf16.mxu0 0
    %168 = vmatpush1.bf16.msra.mxu0 0
    %169 = vmatprep.subr.bf16.mxu0 0
    %170 = vmatpush1.bf16.msra.mxu0 0
    %171 = vmatprep.subr.bf16.mxu0 0
    %172 = vmatpush1.bf16.msra.mxu0 0
    %173 = vmatprep.subr.bf16.mxu0 0
    %174 = vmatpush1.bf16.msra.mxu0 0
    %175 = vmatprep.mubr.bf16.mxu0 0
    %176 = vmatmul.mubr.bf16.gmra.mrb[0].mxu0 %v134
    %v177 = vpop.f32.mrb[0].mxu0
    %v178 = vadd.f32 %v89, %v177
    %v179 = vpop.f32.mrb[0].mxu0
    %v180 = vpop.f32.mrb[0].mxu0
    %v181 = vpop.f32.mrb[0].mxu0
    %182 = vdwg.mxu0
    %v183 = vmul.f32 %v178, 0.5
    %v184 = vtanh.pop %v183
    %v185 = vadd.f32 %v184, 1.0
    %v186 = vmul.f32 %v185, 0.5
    %v187 = vmul.f32 %v178, %v186
    %v188 = vpack.c.bf16 %v187, %v187
    %v189 = vld [vmem:[#allocation7] sm:$0xf]
    %v190 = vld [vmem:[#allocation7 + $0x4] sm:$0xf]
    %v191 = vld [vmem:[#allocation7 + $0x8] sm:$0xf]
    %v192 = vld [vmem:[#allocation7 + $0xc] sm:$0xf]
    %v193 = vld [vmem:[#allocation7 + $0x10] sm:$0xf]
    %v194 = vld [vmem:[#allocation7 + $0x14] sm:$0xf]
    %v195 = vld [vmem:[#allocation7 + $0x18] sm:$0xf]
    %v196 = vld [vmem:[#allocation7 + $0x1c] sm:$0xf]
    %v197 = vld [vmem:[#allocation7 + $0x20] sm:$0xf]
    %v198 = vld [vmem:[#allocation7 + $0x24] sm:$0xf]
    %v199 = vld [vmem:[#allocation7 + $0x28] sm:$0xf]
    %v200 = vld [vmem:[#allocation7 + $0x2c] sm:$0xf]
    %v201 = vld [vmem:[#allocation7 + $0x30] sm:$0xf]
    %v202 = vld [vmem:[#allocation7 + $0x34] sm:$0xf]
    %v203 = vld [vmem:[#allocation7 + $0x38] sm:$0xf]
    %v204 = vld [vmem:[#allocation7 + $0x3c] sm:$0xf]
    %v205 = vld [vmem:[%s4] sm:$0x1]
    %v207 = vlaneseq
    %v208 = vshrl.u32 %v207, 7
    %v209 = vsub.s32 0, %v208
    %v210 = vrot.slane %v205, %v209
    %v228 = vunpack.c.l.b16 %v189
    %v229 = vunpack.c.l.b16 %v190
    %v230 = vunpack.c.l.b16 %v191
    %v231 = vunpack.c.l.b16 %v192
    %v232 = vunpack.c.l.b16 %v193
    %v233 = vunpack.c.l.b16 %v194
    %v234 = vunpack.c.l.b16 %v195
    %v235 = vunpack.c.l.b16 %v196
    %v236 = vunpack.c.l.b16 %v197
    %v237 = vunpack.c.l.b16 %v198
    %v238 = vunpack.c.l.b16 %v199
    %v239 = vunpack.c.l.b16 %v200
    %v240 = vunpack.c.l.b16 %v201
    %v241 = vunpack.c.l.b16 %v202
    %v242 = vunpack.c.l.b16 %v203
    %v243 = vunpack.c.l.b16 %v204
    %v244 = vpack.c.b16 %v229, %v228
    %v245 = vpack.c.b16 %v231, %v230
    %v246 = vpack.c.b16 %v233, %v232
    %v247 = vpack.c.b16 %v235, %v234
    %v248 = vpack.c.b16 %v237, %v236
    %v249 = vpack.c.b16 %v239, %v238
    %v250 = vpack.c.b16 %v241, %v240
    %v251 = vpack.c.b16 %v243, %v242
    %260 = vmatprep.subr.bf16.mxu0 0
    %261 = vmatpush1.bf16.msra.mxu0 %v244
    %262 = vmatprep.subr.bf16.mxu0 0
    %263 = vmatpush1.bf16.msra.mxu0 %v245
    %264 = vmatprep.subr.bf16.mxu0 0
    %265 = vmatpush1.bf16.msra.mxu0 %v246
    %266 = vmatprep.subr.bf16.mxu0 0
    %267 = vmatpush1.bf16.msra.mxu0 %v247
    %268 = vmatprep.subr.bf16.mxu0 0
    %269 = vmatpush1.bf16.msra.mxu0 %v248
    %270 = vmatprep.subr.bf16.mxu0 0
    %271 = vmatpush1.bf16.msra.mxu0 %v249
    %272 = vmatprep.subr.bf16.mxu0 0
    %273 = vmatpush1.bf16.msra.mxu0 %v250
    %274 = vmatprep.subr.bf16.mxu0 0
    %275 = vmatpush1.bf16.msra.mxu0 %v251
    %276 = vmatprep.subr.bf16.mxu0 0
    %277 = vmatpush1.bf16.msra.mxu0 0
    %278 = vmatprep.subr.bf16.mxu0 0
    %279 = vmatpush1.bf16.msra.mxu0 0
    %280 = vmatprep.subr.bf16.mxu0 0
    %281 = vmatpush1.bf16.msra.mxu0 0
    %282 = vmatprep.subr.bf16.mxu0 0
    %283 = vmatpush1.bf16.msra.mxu0 0
    %284 = vmatprep.subr.bf16.mxu0 0
    %285 = vmatpush1.bf16.msra.mxu0 0
    %286 = vmatprep.subr.bf16.mxu0 0
    %287 = vmatpush1.bf16.msra.mxu0 0
    %288 = vmatprep.subr.bf16.mxu0 0
    %289 = vmatpush1.bf16.msra.mxu0 0
    %290 = vmatprep.subr.bf16.mxu0 0
    %291 = vmatpush1.bf16.msra.mxu0 0
    %292 = vmatprep.mubr.bf16.mxu0 0
    %293 = vmatmul.mubr.bf16.gmra.mrb[0].mxu0 %v188
    %v294 = vpop.f32.mrb[0].mxu0
    %v295 = vadd.f32 %v210, %v294
    %v296 = vpop.f32.mrb[0].mxu0
    %v297 = vpop.f32.mrb[0].mxu0
    %v298 = vpop.f32.mrb[0].mxu0
    %299 = vdwg.mxu0
    %v300 = vmul.f32 %v295, 0.5
    %v301 = vtanh.pop %v300
    %v302 = vadd.f32 %v301, 1.0
    %v303 = vmul.f32 %v302, 0.5
    %v304 = vmul.f32 %v295, %v303
    %v305 = vld [vmem:[%s5] sm:$0x1]
    %v307 = vlaneseq
    %v308 = vshrl.u32 %v307, 7
    %v309 = vsub.s32 0, %v308
    %v310 = vrot.slane %v305, %v309
    %v312 = vmul.f32 %v304, %v310
    %313 = vadd.xlane.f32.xlu0 %v312
    %v314 = vpop.xlane.xlu0 %313
    %v315 = vld [vmem:[#allocation2] sm:$0x1]
    %v317 = vlaneseq
    %v318 = vshrl.u32 %v317, 7
    %v319 = vsub.s32 0, %v318
    %v320 = vrot.slane %v315, %v319
    %v322 = vadd.f32 %v314, %v320
    %v323 = vtanh.pop %v322
    %vm324 = vcmask 7168
    %325 = vst.msk [vmem:[%s7] sm:$0xff] %vm324, %v323
    // Predicated region
    $region42: #{tpu_custom_call.1} parent=1 // pred_check
      _
    $region43: #{tpu_custom_call.1} parent=1 // pred_check_branch
      %327 = sbr.rel (0) target = $region45
    $region44: #{tpu_custom_call.1} parent=1 // pred_region
      _
    $region45: #{tpu_custom_call.1} parent=1 // pred_fallthru
      _
    // Predicated region
    $region46: #{tpu_custom_call.1} parent=1 // pred_check
      _
    $region47: #{tpu_custom_call.1} parent=1 // pred_check_branch
      %329 = sbr.rel (0) target = $region49
    $region48: #{tpu_custom_call.1} parent=1 // pred_region
      _
    $region49: #{tpu_custom_call.1} parent=1 // pred_fallthru
      _
    %330 = vsyncpa [#allocation4], 1
    %331 = vsyncpa [#allocation6], 1

</llo_original>
